<compile_context>
chip_gen: v5e
topology: v5e:2x2
jax: 0.10.0
libtpu: 0.0.40
codegen_flags: <defaults>
</compile_context>

<pallas_src>
import jax
import jax.numpy as jnp
from jax.experimental import pallas as pl
from jax.experimental.pallas import tpu as pltpu

EPS = 1.1920928955078125e-07  # torch float eps used in the fx graph


def repro_kernel(x_ref, w1_ref, b1_ref, gamma_ref, w2_ref, b2_ref, o_ref):
    # ---- Linear 1 (addmm): x [TB, Din] @ W1.T, W1 kept in native [H, Din] ----
    h = jax.lax.dot_general(
        x_ref[...], w1_ref[...],
        dimension_numbers=(((1,), (1,)), ((), ())),
        preferred_element_type=jnp.float32)                  # [TB, H] f32
    h = jnp.maximum(h + b1_ref[...], 0.0)                    # bias + ReLU

    # ---- RMS norm over hidden axis, gamma applied in f32 (matches reference) --
    ms = jnp.mean(h * h, axis=1, keepdims=True)              # [TB, 1]
    y = h * jax.lax.rsqrt(ms + EPS) * gamma_ref[...]         # (1,H) broadcast

    # ---- Linear 2 (addmm): y [TB, H] @ W2.T, W2 kept in native [Dout, H] -----
    out = jax.lax.dot_general(
        y, w2_ref[...],
        dimension_numbers=(((1,), (1,)), ((), ())),
        preferred_element_type=jnp.float32)                  # [TB, Dout]
    o_ref[...] = (out + b2_ref[...]).astype(o_ref.dtype)


def repro_forward(w1, b1, x, gamma, w2, b2, *, tile_b=None):
    """Matches Repro.forward(arg0..arg5) argument order:
       arg0=W1 [H,Din], arg1=b1 [H], arg2=x [B,Din],
       arg3=gamma [H], arg4=W2 [Dout,H], arg5=b2 [Dout]."""
    B, Din = x.shape
    H = w1.shape[0]
    Dout = w2.shape[0]

    # Biases/gamma as (1, N) rows for 2-D BlockSpecs (metadata-only reshape).
    b1_2d = b1.reshape(1, H)
    b2_2d = b2.reshape(1, Dout)
    gamma_2d = gamma.reshape(1, H)

    # ---- batch tile selection -------------------------------------------------
    # * multiple of 8 sublanes (or the full batch extent),
    # * >= 2 grid steps when B is non-trivial (v7x 2-TC sharding + DMA overlap),
    # * capped at 512 rows (tile sweeps: 256-512 rows already hit 63-85% of
    #   HBM roofline while amortizing the ~0.35 us per-step overhead).
    if tile_b is None:
        if B <= 128:
            tile_b = B                       # single step; overhead-bound anyway
        else:
            tile_b = min(512, ((B // 2 + 7) // 8) * 8)
    tile_b = max(1, min(tile_b, B))
    if tile_b != B and tile_b % 8 != 0:
        tile_b = ((tile_b + 7) // 8) * 8     # (8,128) sublane rule
        if tile_b >= B:
            tile_b = B

    # ---- generation-aware VMEM budget (v7x only has 64 MiB) -------------------
    def vmem_bytes(tb):
        return (2 * tb * Din * 4            # x tile, double-buffered
                + 2 * tb * Dout * 4         # out tile, double-buffered
                + (H * Din + Dout * H + 2 * H + Dout) * 4   # residents, 1 buffer
                + 4 * tb * H * 4)           # f32 activation intermediates

    VMEM_CAP = 32 << 20                      # safe headroom on every generation
    while tile_b > 8 and 2 * vmem_bytes(tile_b) > VMEM_CAP:
        tile_b = max(8, ((tile_b // 2 + 7) // 8) * 8)
    vmem_limit = int(min(max(2 * vmem_bytes(tile_b), 4 << 20), VMEM_CAP))

    grid = (pl.cdiv(B, tile_b),)
    # Ragged last tile: padded rows flow through rsqrt of unspecified data but
    # each row's statistics are independent and padded rows are masked on store.

    cost = pl.CostEstimate(
        flops=2 * B * (Din * H + H * Dout),
        transcendentals=B,                                   # one rsqrt per row
        bytes_accessed=(x.size + w1.size + w2.size + gamma.size
                        + b1.size + b2.size + B * Dout) * 4,
    )

    resident = dict(pipeline_mode=pl.Buffered(1))            # never re-fetched

    return pl.pallas_call(
        repro_kernel,
        out_shape=jax.ShapeDtypeStruct((B, Dout), x.dtype),
        grid=grid,
        in_specs=[
            pl.BlockSpec((tile_b, Din), lambda i: (i, 0)),             # x: batch-tiled
            pl.BlockSpec((H, Din), lambda i: (0, 0), **resident),      # W1
            pl.BlockSpec((1, H), lambda i: (0, 0), **resident),        # b1
            pl.BlockSpec((1, H), lambda i: (0, 0), **resident),        # gamma
            pl.BlockSpec((Dout, H), lambda i: (0, 0), **resident),     # W2
            pl.BlockSpec((1, Dout), lambda i: (0, 0), **resident),     # b2
        ],
        out_specs=pl.BlockSpec((tile_b, Dout), lambda i: (i, 0)),
        compiler_params=pltpu.CompilerParams(
            dimension_semantics=("parallel",),
            vmem_limit_bytes=vmem_limit),
        cost_estimate=cost,
    )(x, w1, b1_2d, gamma_2d, w2, b2_2d)


def repro_reference(w1, b1, x, gamma, w2, b2):
    h = jnp.maximum(x @ w1.T + b1, 0.0)
    ms = jnp.mean(h * h, axis=1, keepdims=True)
    y = h * jax.lax.rsqrt(ms + EPS) * gamma
    return y @ w2.T + b2


if __name__ == "__main__":
    B, Din, H, Dout = 8, 32, 64, 32
    key = jax.random.PRNGKey(0)
    k0, k1, k2, k3, k4, k5 = jax.random.split(key, 6)

    w1 = jax.random.normal(k0, (H, Din), jnp.float32) * 0.1     # arg0_1
    b1 = jax.random.normal(k1, (H,), jnp.float32) * 0.1         # arg1_1
    x = jax.random.normal(k2, (B, Din), jnp.float32)            # arg2_1
    gamma = jax.random.normal(k3, (H,), jnp.float32) + 1.0      # arg3_1
    w2 = jax.random.normal(k4, (Dout, H), jnp.float32) * 0.1    # arg4_1
    b2 = jax.random.normal(k5, (Dout,), jnp.float32) * 0.1      # arg5_1

    out = repro_forward(w1, b1, x, gamma, w2, b2)
    jax.block_until_ready(out)

    ref = repro_reference(w1, b1, x, gamma, w2, b2)
    assert out.shape == (B, Dout)
    # Everything stays in f32 (MXU f32 passes, f32 accumulation), so a tight
    # tolerance vs the f32 reference is appropriate.
    assert jnp.allclose(out, ref, atol=1e-3, rtol=1e-3), "mismatch vs reference"

    print("KERNEL_OK")
</pallas_src>

<mosaic_0001>
module attributes {stable_mosaic.version = 11 : i64} {
  func.func @repro_kernel(%arg0: i32, %arg1: memref<8x32xf32, #tpu.memory_space<vmem>>, %arg2: memref<64x32xf32, #tpu.memory_space<vmem>>, %arg3: memref<1x64xf32, #tpu.memory_space<vmem>>, %arg4: memref<1x64xf32, #tpu.memory_space<vmem>>, %arg5: memref<32x64xf32, #tpu.memory_space<vmem>>, %arg6: memref<1x32xf32, #tpu.memory_space<vmem>>, %arg7: memref<8x32xf32, #tpu.memory_space<vmem>>) attributes {dimension_semantics = [#tpu.dimension_semantics<parallel>], iteration_bounds = array<i64: 1>, scalar_prefetch = 0 : i64, scratch_operands = 0 : i64, tpu.core_type = #tpu.core_type<tc>, window_params = [{transform_indices = @transform_0, window_bounds = array<i64: 8, 32>}, {pipeline_mode = #tpu.pipeline_mode<synchronous>, transform_indices = @transform_1, window_bounds = array<i64: 64, 32>}, {pipeline_mode = #tpu.pipeline_mode<synchronous>, transform_indices = @transform_2, window_bounds = array<i64: 1, 64>}, {pipeline_mode = #tpu.pipeline_mode<synchronous>, transform_indices = @transform_3, window_bounds = array<i64: 1, 64>}, {pipeline_mode = #tpu.pipeline_mode<synchronous>, transform_indices = @transform_4, window_bounds = array<i64: 32, 64>}, {pipeline_mode = #tpu.pipeline_mode<synchronous>, transform_indices = @transform_5, window_bounds = array<i64: 1, 32>}, {transform_indices = @transform_6, window_bounds = array<i64: 8, 32>}]} {
    %c0 = arith.constant 0 : index
    %c0_0 = arith.constant 0 : index
    %0 = vector.load %arg1[%c0, %c0_0] : memref<8x32xf32, #tpu.memory_space<vmem>>, vector<8x32xf32>
    %c0_1 = arith.constant 0 : index
    %c0_2 = arith.constant 0 : index
    %1 = vector.load %arg2[%c0_1, %c0_2] : memref<64x32xf32, #tpu.memory_space<vmem>>, vector<64x32xf32>
    %cst = arith.constant dense<0.000000e+00> : vector<8x64xf32>
    %2 = tpu.matmul %0, %1, %cst {dimension_numbers = #tpu.dot_dimension_numbers<[1], [1], [0], [0], [0, 0, 1, 0], [], []>} : vector<8x32xf32>, vector<64x32xf32>, vector<8x64xf32> -> vector<8x64xf32>
    %c0_3 = arith.constant 0 : index
    %c0_4 = arith.constant 0 : index
    %3 = vector.load %arg3[%c0_3, %c0_4] : memref<1x64xf32, #tpu.memory_space<vmem>>, vector<1x64xf32>
    %4 = vector.broadcast %3 : vector<1x64xf32> to vector<8x64xf32>
    %5 = arith.addf %2, %4 : vector<8x64xf32>
    %cst_5 = arith.constant 0.000000e+00 : f32
    %6 = vector.broadcast %cst_5 : f32 to vector<8x64xf32>
    %7 = arith.maximumf %5, %6 : vector<8x64xf32>
    %8 = arith.mulf %7, %7 : vector<8x64xf32>
    %cst_6 = arith.constant dense<0.000000e+00> : vector<8xf32>
    %9 = vector.multi_reduction <add>, %8, %cst_6 [1] : vector<8x64xf32> to vector<8xf32>
    %10 = vector.shape_cast %9 : vector<8xf32> to vector<8x1xf32>
    %cst_7 = arith.constant 6.400000e+01 : f32
    %11 = vector.broadcast %cst_7 : f32 to vector<8x1xf32>
    %12 = arith.divf %10, %11 : vector<8x1xf32>
    %cst_8 = arith.constant 1.1920929E-7 : f32
    %13 = vector.broadcast %cst_8 : f32 to vector<8x1xf32>
    %14 = arith.addf %12, %13 : vector<8x1xf32>
    %15 = math.rsqrt %14 : vector<8x1xf32>
    %16 = vector.broadcast %15 : vector<8x1xf32> to vector<8x64xf32>
    %17 = arith.mulf %7, %16 : vector<8x64xf32>
    %c0_9 = arith.constant 0 : index
    %c0_10 = arith.constant 0 : index
    %18 = vector.load %arg4[%c0_9, %c0_10] : memref<1x64xf32, #tpu.memory_space<vmem>>, vector<1x64xf32>
    %19 = vector.broadcast %18 : vector<1x64xf32> to vector<8x64xf32>
    %20 = arith.mulf %17, %19 : vector<8x64xf32>
    %c0_11 = arith.constant 0 : index
    %c0_12 = arith.constant 0 : index
    %21 = vector.load %arg5[%c0_11, %c0_12] : memref<32x64xf32, #tpu.memory_space<vmem>>, vector<32x64xf32>
    %cst_13 = arith.constant dense<0.000000e+00> : vector<8x32xf32>
    %22 = tpu.matmul %20, %21, %cst_13 {dimension_numbers = #tpu.dot_dimension_numbers<[1], [1], [0], [0], [0, 0, 1, 0], [], []>} : vector<8x64xf32>, vector<32x64xf32>, vector<8x32xf32> -> vector<8x32xf32>
    %c0_14 = arith.constant 0 : index
    %c0_15 = arith.constant 0 : index
    %23 = vector.load %arg6[%c0_14, %c0_15] : memref<1x32xf32, #tpu.memory_space<vmem>>, vector<1x32xf32>
    %24 = vector.broadcast %23 : vector<1x32xf32> to vector<8x32xf32>
    %25 = arith.addf %22, %24 : vector<8x32xf32>
    %c0_16 = arith.constant 0 : index
    %c0_17 = arith.constant 0 : index
    %26 = vector.load %arg7[%c0_16, %c0_17] : memref<8x32xf32, #tpu.memory_space<vmem>>, vector<8x32xf32>
    tpu.vector_store %arg7[%c0_16, %c0_17], %25 {strides = array<i32>} : memref<8x32xf32, #tpu.memory_space<vmem>>, vector<8x32xf32>,
    return
  }
  func.func @transform_0(%arg0: i32) -> (i32, i32) {
    %c0_i32 = arith.constant 0 : i32
    %c0_i32_0 = arith.constant 0 : i32
    return %arg0, %c0_i32 : i32, i32
  }
  func.func @transform_1(%arg0: i32) -> (i32, i32) {
    %c0_i32 = arith.constant 0 : i32
    %c0_i32_0 = arith.constant 0 : i32
    %c0_i32_1 = arith.constant 0 : i32
    return %c0_i32, %c0_i32_0 : i32, i32
  }
  func.func @transform_2(%arg0: i32) -> (i32, i32) {
    %c0_i32 = arith.constant 0 : i32
    %c0_i32_0 = arith.constant 0 : i32
    %c0_i32_1 = arith.constant 0 : i32
    return %c0_i32, %c0_i32_0 : i32, i32
  }
  func.func @transform_3(%arg0: i32) -> (i32, i32) {
    %c0_i32 = arith.constant 0 : i32
    %c0_i32_0 = arith.constant 0 : i32
    %c0_i32_1 = arith.constant 0 : i32
    return %c0_i32, %c0_i32_0 : i32, i32
  }
  func.func @transform_4(%arg0: i32) -> (i32, i32) {
    %c0_i32 = arith.constant 0 : i32
    %c0_i32_0 = arith.constant 0 : i32
    %c0_i32_1 = arith.constant 0 : i32
    return %c0_i32, %c0_i32_0 : i32, i32
  }
  func.func @transform_5(%arg0: i32) -> (i32, i32) {
    %c0_i32 = arith.constant 0 : i32
    %c0_i32_0 = arith.constant 0 : i32
    %c0_i32_1 = arith.constant 0 : i32
    return %c0_i32, %c0_i32_0 : i32, i32
  }
  func.func @transform_6(%arg0: i32) -> (i32, i32) {
    %c0_i32 = arith.constant 0 : i32
    %c0_i32_0 = arith.constant 0 : i32
    return %arg0, %c0_i32 : i32, i32
  }
}

</mosaic_0001>

<llo_original>
// kernel: tpu_custom_call.1
$region0: #{tpu_custom_call.1}
  #allocation0 [shape = 'u32[]', space=smem, size = 0x4, offset = 0x4, fixed_abs, tag = 'smem constant byte address 0x4 - core index']
  #allocation1 [shape = 'u32[72,128]{1,0:T(1,128)}', space=vmem, size = 0x9000, scoped, tag = 'internal scratch']
  %s0 = inlined_call_operand.vmem [shape: f32[8,32], index: 0, kind: input, shape index: {}]
  %s1 = inlined_call_operand.vmem [shape: f32[64,32], index: 1, kind: input, shape index: {}]
  %s2 = inlined_call_operand.vmem [shape: f32[1,64], index: 2, kind: input, shape index: {}]
  %s3 = inlined_call_operand.vmem [shape: f32[1,64], index: 3, kind: input, shape index: {}]
  %s4 = inlined_call_operand.vmem [shape: f32[32,64], index: 4, kind: input, shape index: {}]
  %s5 = inlined_call_operand.vmem [shape: f32[1,32], index: 5, kind: input, shape index: {}]
  %s6 = inlined_call_operand.hbm [shape: f32[8,32], index: 6, kind: output, shape index: {}]
  %s7 = sld [smem:[#allocation0]]
  $region34: #{tpu_custom_call.1} parent=0
    _
  %s9 = ssub.s32 1, %s7
  %s10 = scalar_select 0, %s9, %s7
  $region1: #{tpu_custom_call.1} parent=0
    #allocation2 [shape = 'u8[4096]{0}', space=vmem, size = 0x1000, scoped, tag = 'output window, operand 0, single buffered']
    #allocation3 [shape = 's32[1]{0}', space=sflag, size = 0x4, scoped, tag = 'scoped memory for tpu_custom_call.1']
    %11 = vsyncpa [#allocation3], 0
    // Predicated region
    $region2: #{tpu_custom_call.1} parent=1 // pred_check
      _
    $region3: #{tpu_custom_call.1} parent=1 // pred_check_branch
      %13 = sbr.rel (0) target = $region5
    $region4: #{tpu_custom_call.1} parent=1 // pred_region
      _
    $region5: #{tpu_custom_call.1} parent=1 // pred_fallthru
      _
    // Predicated region
    $region6: #{tpu_custom_call.1} parent=1 // pred_check
      _
    $region7: #{tpu_custom_call.1} parent=1 // pred_check_branch
      %15 = sbr.rel (0) target = $region9
    $region8: #{tpu_custom_call.1} parent=1 // pred_region
      _
    $region9: #{tpu_custom_call.1} parent=1 // pred_fallthru
      _
    // Predicated region
    $region10: #{tpu_custom_call.1} parent=1 // pred_check
      _
    $region11: #{tpu_custom_call.1} parent=1 // pred_check_branch
      %17 = sbr.rel (0) target = $region13
    $region12: #{tpu_custom_call.1} parent=1 // pred_region
      _
    $region13: #{tpu_custom_call.1} parent=1 // pred_fallthru
      _
    // Predicated region
    $region14: #{tpu_custom_call.1} parent=1 // pred_check
      _
    $region15: #{tpu_custom_call.1} parent=1 // pred_check_branch
      %19 = sbr.rel (0) target = $region17
    $region16: #{tpu_custom_call.1} parent=1 // pred_region
      _
    $region17: #{tpu_custom_call.1} parent=1 // pred_fallthru
      _
    // Predicated region
    $region18: #{tpu_custom_call.1} parent=1 // pred_check
      _
    $region19: #{tpu_custom_call.1} parent=1 // pred_check_branch
      %21 = sbr.rel (0) target = $region21
    $region20: #{tpu_custom_call.1} parent=1 // pred_region
      _
    $region21: #{tpu_custom_call.1} parent=1 // pred_fallthru
      _
    // Predicated region
    $region22: #{tpu_custom_call.1} parent=1 // pred_check
      _
    $region23: #{tpu_custom_call.1} parent=1 // pred_check_branch
      %23 = sbr.rel (0) target = $region25
    $region24: #{tpu_custom_call.1} parent=1 // pred_region
      _
    $region25: #{tpu_custom_call.1} parent=1 // pred_fallthru
      _
    %v24 = vld [vmem:[%s0] sm:$0xff]
    %v25 = vld [vmem:[%s1] sm:$0xff]
    %v26 = vld [vmem:[%s1 + $0x8] sm:$0xff]
    %v27 = vld [vmem:[%s1 + $0x10] sm:$0xff]
    %v28 = vld [vmem:[%s1 + $0x18] sm:$0xff]
    %v29 = vld [vmem:[%s1 + $0x20] sm:$0xff]
    %v30 = vld [vmem:[%s1 + $0x28] sm:$0xff]
    %v31 = vld [vmem:[%s1 + $0x30] sm:$0xff]
    %v32 = vld [vmem:[%s1 + $0x38] sm:$0xff]
    %v33 = vld [vmem:[%s2] sm:$0x1]
    %v35 = vperm.slane %v33, 0
    %vm37 = vcmask 261120
    %v39 = vsel %vm37, %v24, 0
    %v42 = vsel %vm37, %v25, 0
    %v45 = vsel %vm37, %v26, 0
    %v48 = vsel %vm37, %v27, 0
    %v51 = vsel %vm37, %v28, 0
    %v54 = vsel %vm37, %v29, 0
    %v57 = vsel %vm37, %v30, 0
    %v60 = vsel %vm37, %v31, 0
    %v63 = vsel %vm37, %v32, 0
    %65 = vmatpush.xpose.msra.mxu0 0.0
    %66 = vmatpush.xpose.msra.mxu0 0.0
    %67 = vmatpush.xpose.msra.mxu0 0.0
    %68 = vmatpush.xpose.msra.mxu0 0.0
    %69 = vmatpush.xpose.msra.mxu0 0.0
    %70 = vmatpush.xpose.msra.mxu0 0.0
    %71 = vmatpush.xpose.msra.mxu0 0.0
    %72 = vmatpush.xpose.msra.mxu0 0.0
    %73 = vmatpush.xpose.msra.mxu0 %v63
    %74 = vmatpush.xpose.msra.mxu0 %v60
    %75 = vmatpush.xpose.msra.mxu0 %v57
    %76 = vmatpush.xpose.msra.mxu0 %v54
    %77 = vmatpush.xpose.msra.mxu0 %v51
    %78 = vmatpush.xpose.msra.mxu0 %v48
    %79 = vmatpush.xpose.msra.mxu0 %v45
    %80 = vmatpush.xpose.msra.mxu0 %v42
    %81 = vmatmul.f32.gmra.mxu0 %v39
    %v82 = vpop.f32.mrf.mxu0
    %v83 = vadd.f32 %v35, %v82
    %84 = vdwg.mxu0
    %v85 = vmax.f32 %v83, 0.0
    %v86 = vmul.f32 %v85, %v85
    %vm87 = vcmask 523264
    %v88 = vsel %vm87, %v86, 0.0
    %89 = vadd.xlane.f32.xlu0 %v88
    %v90 = vpop.xlane.xlu0 %89
    %v91 = vrcp.pop 64.0
    %v92 = vmul.f32 64.0, %v91
    %v93 = vsub.f32 1.0, %v92
    %v94 = vmul.f32 %v91, %v93
    %v95 = vadd.f32 %v91, %v94
    %vm96 = vweird.f32 %v91
    %v97 = vsel %vm96, %v91, %v95
    %v98 = vmul.f32 %v90, %v97
    %v99 = vadd.f32 %v98, 1.1920929e-07
    %v100 = vrsqrt.pop %v99
    %v101 = vmul.f32 %v100, %v99
    %v102 = vmul.f32 %v101, %v100
    %v103 = vmul.f32 0.5, %v102
    %v104 = vsub.f32 1.5, %v103
    %v105 = vmul.f32 %v100, %v104
    %vm106 = vweird.f32 %v99
    %vm107 = vweird.f32 %v100
    %vm108 = vmor %vm106, %vm107
    %v109 = vsel %vm108, %v100, %v105
    %v110 = vmul.f32 %v85, %v109
    %v111 = vld [vmem:[%s3] sm:$0x1]
    %v113 = vperm.slane %v111, 0
    %v115 = vmul.f32 %v110, %v113
    %v116 = vld [vmem:[%s4] sm:$0xff]
    %v117 = vld [vmem:[%s4 + $0x8] sm:$0xff]
    %v118 = vld [vmem:[%s4 + $0x10] sm:$0xff]
    %v119 = vld [vmem:[%s4 + $0x18] sm:$0xff]
    %v120 = vld [vmem:[%s5] sm:$0x1]
    %v122 = vperm.slane %v120, 0
    %v125 = vsel %vm87, %v115, 0
    %v128 = vsel %vm87, %v116, 0
    %v131 = vsel %vm87, %v117, 0
    %v134 = vsel %vm87, %v118, 0
    %v137 = vsel %vm87, %v119, 0
    %139 = vmatpush.xpose.msra.mxu0 0.0
    %140 = vmatpush.xpose.msra.mxu0 0.0
    %141 = vmatpush.xpose.msra.mxu0 0.0
    %142 = vmatpush.xpose.msra.mxu0 0.0
    %143 = vmatpush.xpose.msra.mxu0 0.0
    %144 = vmatpush.xpose.msra.mxu0 0.0
    %145 = vmatpush.xpose.msra.mxu0 0.0
    %146 = vmatpush.xpose.msra.mxu0 0.0
    %147 = vmatpush.xpose.msra.mxu0 0.0
    %148 = vmatpush.xpose.msra.mxu0 0.0
    %149 = vmatpush.xpose.msra.mxu0 0.0
    %150 = vmatpush.xpose.msra.mxu0 0.0
    %151 = vmatpush.xpose.msra.mxu0 %v137
    %152 = vmatpush.xpose.msra.mxu0 %v134
    %153 = vmatpush.xpose.msra.mxu0 %v131
    %154 = vmatpush.xpose.msra.mxu0 %v128
    %155 = vmatmul.f32.gmra.mxu0 %v125
    %v156 = vpop.f32.mrf.mxu0
    %v157 = vadd.f32 %v122, %v156
    %158 = vdwg.mxu0
    %159 = vst.msk [vmem:[#allocation2] sm:$0xff] %vm37, %v157
    // Predicated region
    $region26: #{tpu_custom_call.1} parent=1 // pred_check
      _
    $region27: #{tpu_custom_call.1} parent=1 // pred_check_branch
      %161 = sbr.rel (0) target = $region29
    $region28: #{tpu_custom_call.1} parent=1 // pred_region
      %163 = vsyncadd [#allocation3], 0
      %s165 = sshll.u32 [#allocation2], 4
      %s166 = int_to_ptr.vmem [resolvable:$true] %s165
      %s167 = sshll.u32 %s6, 4
      %s168 = int_to_ptr.hbm [resolvable:$true] %s167
      %170 = dma.vmem_to_hbm [thread:$0]  %s166, 128, %s168, [#allocation3]
    $region29: #{tpu_custom_call.1} parent=1 // pred_fallthru
      _
    // Predicated region
    $region30: #{tpu_custom_call.1} parent=1 // pred_check
      _
    $region31: #{tpu_custom_call.1} parent=1 // pred_check_branch
      %172 = sbr.rel (0) target = $region33
    $region32: #{tpu_custom_call.1} parent=1 // pred_region
      %174 = dma.done [#allocation3], 128
    $region33: #{tpu_custom_call.1} parent=1 // pred_fallthru
      _
    %175 = vsyncpa [#allocation3], 1

</llo_original>
